<compile_context>
chip_gen: v5e
topology: v5e:2x2
jax: 0.10.0
libtpu: 0.0.40
codegen_flags: <defaults>
</compile_context>

<pallas_src>
import functools

import jax
import jax.numpy as jnp
from jax.experimental import pallas as pl
from jax.experimental.pallas import tpu as pltpu

LANE = 128          # vreg lane width
SUBLANE = 8         # vreg sublane depth (f32)
MAX_TILE_ROWS = 1024  # 1024*128*4B = 512 KiB per tile, well under VMEM on v5e/v6e/v7x


# ------------------------------ Pallas kernel --------------------------------
def _abs_mean_kernel(x_ref, out_ref, acc_ref, *, inv_count):
    """Accumulate sum(|x|) over all grid steps, emit mean at the last step.

    x_ref:   (TILE_ROWS, 128) f32 tile in VMEM (zero-padded past the real data)
    out_ref: (1, 1)           f32 scalar result in SMEM
    acc_ref: (8, 128)         f32 lane-dense partial-sum accumulator (VMEM scratch)
    """
    i = pl.program_id(0)

    @pl.when(i == 0)
    def _():
        acc_ref[...] = jnp.zeros_like(acc_ref)

    a = jnp.abs(x_ref[...])                                   # VPU, fully lane-dense
    # Fold the row tile into one (8, 128) vreg-shaped accumulator: the reshape only
    # regroups whole sublane tiles (no data movement) and the sum over axis 0 is
    # plain elementwise VPU adds -- no cross-lane traffic inside the loop.
    acc_ref[...] += a.reshape(-1, SUBLANE, LANE).sum(axis=0)

    @pl.when(i == pl.num_programs(0) - 1)
    def _():
        # Single cross-lane/sublane reduction (XLU) for the whole kernel, then scale
        # by 1/true_count (padding zeros contribute nothing to the sum).
        out_ref[0, 0] = jnp.sum(acc_ref[...]) * inv_count


# ------------------------------ host wrapper ----------------------------------
def deformation_prior_loss(delta_d):
    """JAX/Pallas equivalent of DeformationPriorLoss.forward: mean(|delta_d|)."""
    x = delta_d.astype(jnp.float32).reshape(-1)
    n = x.shape[0]

    # Lay the data out lane-dense: (rows, 128), rows padded to a multiple of 8 so every
    # block is a whole (8, 128) tile (no masked loads / ragged tiles).
    rows = -(-n // LANE)
    rows_pad = -(-rows // SUBLANE) * SUBLANE
    if rows_pad <= MAX_TILE_ROWS:
        tile_rows = rows_pad                       # single big tile, grid = 1
    else:
        tile_rows = MAX_TILE_ROWS
        rows_pad = -(-rows_pad // tile_rows) * tile_rows

    pad = rows_pad * LANE - n
    if pad:
        x = jnp.pad(x, (0, pad))                   # zeros: |0| adds 0 to the sum
    x2d = x.reshape(rows_pad, LANE)

    grid = rows_pad // tile_rows
    kernel = functools.partial(_abs_mean_kernel, inv_count=1.0 / float(n))

    out = pl.pallas_call(
        kernel,
        out_shape=jax.ShapeDtypeStruct((1, 1), jnp.float32),
        grid=(grid,),
        in_specs=[pl.BlockSpec((tile_rows, LANE), lambda i: (i, 0))],
        out_specs=pl.BlockSpec((1, 1), lambda i: (0, 0),
                               memory_space=pltpu.MemorySpace.SMEM),
        scratch_shapes=[pltpu.VMEM((SUBLANE, LANE), jnp.float32)],
        compiler_params=pltpu.CompilerParams(
            dimension_semantics=("arbitrary",)),   # reduction axis
    )(x2d)
    return out[0, 0]


# ----------------------------------- main --------------------------------------
if __name__ == "__main__":
    key = jax.random.PRNGKey(0)
    # delta_d: per-vertex 3D deformation offsets, e.g. (batch=2, n_points=512, 3)
    delta_d = jax.random.normal(key, (2, 512, 3), jnp.float32)

    loss = jax.jit(deformation_prior_loss)(delta_d)
    jax.block_until_ready(loss)

    ref = jnp.mean(jnp.abs(delta_d))
    assert loss.shape == ()
    assert jnp.allclose(loss, ref, rtol=1e-5, atol=1e-6), (loss, ref)

    print("KERNEL_OK")
</pallas_src>

<mosaic_0001>
module attributes {stable_mosaic.version = 11 : i64} {
  func.func @_abs_mean_kernel(%arg0: i32, %arg1: memref<24x128xf32, #tpu.memory_space<vmem>>, %arg2: memref<1x1xf32, #tpu.memory_space<smem>>, %arg3: memref<8x128xf32, #tpu.memory_space<vmem>>) attributes {dimension_semantics = [#tpu.dimension_semantics<arbitrary>], iteration_bounds = array<i64: 1>, scalar_prefetch = 0 : i64, scratch_operands = 1 : i64, tpu.core_type = #tpu.core_type<tc>, window_params = [{transform_indices = @transform_0, window_bounds = array<i64: 24, 128>}, {transform_indices = @transform_1, window_bounds = array<i64: 1, 1>}]} {
    %c0_i32 = arith.constant 0 : i32
    %0 = arith.cmpi eq, %arg0, %c0_i32 : i32
    %1 = arith.extui %0 : i1 to i32
    %c0_i32_0 = arith.constant 0 : i32
    %2 = arith.cmpi ne, %1, %c0_i32_0 : i32
    scf.if %2 {
      %cst_8 = arith.constant 0.000000e+00 : f32
      %13 = vector.broadcast %cst_8 : f32 to vector<8x128xf32>
      %c0_9 = arith.constant 0 : index
      %c0_10 = arith.constant 0 : index
      %14 = vector.load %arg3[%c0_9, %c0_10] : memref<8x128xf32, #tpu.memory_space<vmem>>, vector<8x128xf32>
      tpu.vector_store %arg3[%c0_9, %c0_10], %13 {strides = array<i32>} : memref<8x128xf32, #tpu.memory_space<vmem>>, vector<8x128xf32>,
    } else {
    }
    %c0 = arith.constant 0 : index
    %c0_1 = arith.constant 0 : index
    %3 = vector.load %arg1[%c0, %c0_1] : memref<24x128xf32, #tpu.memory_space<vmem>>, vector<24x128xf32>
    %4 = math.absf %3 : vector<24x128xf32>
    %c0_2 = arith.constant 0 : index
    %c0_3 = arith.constant 0 : index
    %5 = vector.load %arg3[%c0_2, %c0_3] : memref<8x128xf32, #tpu.memory_space<vmem>>, vector<8x128xf32>
    %6 = vector.shape_cast %4 : vector<24x128xf32> to vector<3x8x128xf32>
    %cst = arith.constant dense<0.000000e+00> : vector<8x128xf32>
    %7 = vector.multi_reduction <add>, %6, %cst [0] : vector<3x8x128xf32> to vector<8x128xf32>
    %8 = arith.addf %5, %7 : vector<8x128xf32>
    %c0_4 = arith.constant 0 : index
    %c0_5 = arith.constant 0 : index
    %9 = vector.load %arg3[%c0_4, %c0_5] : memref<8x128xf32, #tpu.memory_space<vmem>>, vector<8x128xf32>
    tpu.vector_store %arg3[%c0_4, %c0_5], %8 {strides = array<i32>} : memref<8x128xf32, #tpu.memory_space<vmem>>, vector<8x128xf32>,
    %c0_i32_6 = arith.constant 0 : i32
    %10 = arith.cmpi eq, %arg0, %c0_i32_6 : i32
    %11 = arith.extui %10 : i1 to i32
    %c0_i32_7 = arith.constant 0 : i32
    %12 = arith.cmpi ne, %11, %c0_i32_7 : i32
    scf.if %12 {
      %c0_8 = arith.constant 0 : index
      %c0_9 = arith.constant 0 : index
      %13 = vector.load %arg3[%c0_8, %c0_9] : memref<8x128xf32, #tpu.memory_space<vmem>>, vector<8x128xf32>
      %14 = vector.shape_cast %13 : vector<8x128xf32> to vector<1x8x128xf32>
      %cst_10 = arith.constant dense<0.000000e+00> : vector<1xf32>
      %15 = vector.multi_reduction <add>, %14, %cst_10 [1, 2] : vector<1x8x128xf32> to vector<1xf32>
      %16 = vector.shape_cast %15 : vector<1xf32> to vector<1x1x1xf32>
      %17 = vector.extract %16[0, 0, 0] : f32 from vector<1x1x1xf32>
      %cst_11 = arith.constant 3.25520843E-4 : f32
      %18 = arith.mulf %17, %cst_11 : f32
      %c0_12 = arith.constant 0 : index
      %c0_13 = arith.constant 0 : index
      %19 = memref.load %arg2[%c0_12, %c0_13] : memref<1x1xf32, #tpu.memory_space<smem>>
      memref.store %18, %arg2[%c0_12, %c0_13] : memref<1x1xf32, #tpu.memory_space<smem>>
    } else {
    }
    return
  }
  func.func @transform_0(%arg0: i32) -> (i32, i32) {
    %c0_i32 = arith.constant 0 : i32
    %c0_i32_0 = arith.constant 0 : i32
    return %arg0, %c0_i32 : i32, i32
  }
  func.func @transform_1(%arg0: i32) -> (i32, i32) {
    %c0_i32 = arith.constant 0 : i32
    %c0_i32_0 = arith.constant 0 : i32
    %c0_i32_1 = arith.constant 0 : i32
    return %c0_i32, %c0_i32_0 : i32, i32
  }
}

</mosaic_0001>

<llo_original>
// kernel: deformation_prior_loss.1
$region0: #{deformation_prior_loss.1}
  #allocation0 [shape = 'u32[]', space=smem, size = 0x4, offset = 0x4, fixed_abs, tag = 'smem constant byte address 0x4 - core index']
  #allocation1 [shape = 'u32[72,128]{1,0:T(1,128)}', space=vmem, size = 0x9000, scoped, tag = 'internal scratch']
  #allocation2 [shape = 'f32[8,128]{1,0:T(8,128)}', space=vmem, size = 0x1000, scoped, tag = 'scratch operand']
  %s0 = inlined_call_operand.vmem [shape: f32[24,128], index: 0, kind: input, shape index: {}]
  %s1 = inlined_call_operand.hbm [shape: f32[1,1], index: 1, kind: output, shape index: {}]
  %s2 = sld [smem:[#allocation0]]
  $region22: #{deformation_prior_loss.1} parent=0
    _
  %s4 = ssub.s32 1, %s2
  %s5 = scalar_select 0, %s4, %s2
  $region1: #{deformation_prior_loss.1} parent=0
    #allocation3 [shape = 'u8[512]{0}', space=smem, size = 0x200, scoped, tag = 'output window, operand 0, single buffered']
    #allocation4 [shape = 's32[1]{0}', space=sflag, size = 0x4, scoped, tag = 'scoped memory for deformation_prior_loss.1']
    %6 = vsyncpa [#allocation4], 0
    // Predicated region
    $region2: #{deformation_prior_loss.1} parent=1 // pred_check
      _
    $region3: #{deformation_prior_loss.1} parent=1 // pred_check_branch
      %8 = sbr.rel (0) target = $region5
    $region4: #{deformation_prior_loss.1} parent=1 // pred_region
      _
    $region5: #{deformation_prior_loss.1} parent=1 // pred_fallthru
      _
    %p9 = scmp.eq.s32.totalorder 0, 0
    // Predicated region
    $region6: #{deformation_prior_loss.1} parent=1 // pred_check
      %p10 = pneg %p9
    $region7: #{deformation_prior_loss.1} parent=1 // pred_check_branch
      %12 = sbr.rel (%p10) target = $region9
    $region8: #{deformation_prior_loss.1} parent=1 // pred_region
      %13 = vst [vmem:[#allocation2] sm:$0xff] 0.0
    $region9: #{deformation_prior_loss.1} parent=1 // pred_fallthru
      _
    %v14 = vld [vmem:[%s0] sm:$0xff]
    %v15 = vld [vmem:[%s0 + $0x8] sm:$0xff]
    %v16 = vld [vmem:[%s0 + $0x10] sm:$0xff]
    %v17 = vand.u32 2147483647, %v14
    %v18 = vand.u32 2147483647, %v15
    %v19 = vand.u32 2147483647, %v16
    %v20 = vld [vmem:[#allocation2] sm:$0xff]
    %v21 = vadd.f32 %v17, %v18
    %v22 = vadd.f32 %v21, %v19
    %v23 = vadd.f32 %v20, %v22
    %24 = vst [vmem:[#allocation2] sm:$0xff] %v23
    // Predicated region
    $region10: #{deformation_prior_loss.1} parent=1 // pred_check
      %p25 = pneg %p9
    $region11: #{deformation_prior_loss.1} parent=1 // pred_check_branch
      %27 = sbr.rel (%p25) target = $region13
    $region12: #{deformation_prior_loss.1} parent=1 // pred_region
      %v28 = vld [vmem:[#allocation2] sm:$0xff]
      %29 = vadd.xlane.f32.xlu0 %v28
      %v30 = vpop.xlane.xlu0 %29
      %v31 = vrot.slane %v30, 4
      %v32 = vadd.f32 %v30, %v31
      %v33 = vrot.slane %v32, 2
      %v34 = vadd.f32 %v32, %v33
      %v35 = vrot.slane %v34, 1
      %v36 = vadd.f32 %v34, %v35
      %s37 = vtos %v36
      %s38 = smul.f32 %s37, 0.00032552084
      %s39 = scalar_lea.smem [#allocation3], 0
      %40 = sst [smem:[%s39]] %s38
    $region13: #{deformation_prior_loss.1} parent=1 // pred_fallthru
      _
    // Predicated region
    $region14: #{deformation_prior_loss.1} parent=1 // pred_check
      _
    $region15: #{deformation_prior_loss.1} parent=1 // pred_check_branch
      %42 = sbr.rel (0) target = $region17
    $region16: #{deformation_prior_loss.1} parent=1 // pred_region
      %44 = vsyncadd [#allocation4], 0
      %s46 = sshll.u32 %s1, 4
      %s47 = int_to_ptr.hbm [resolvable:$true] %s46
      %49 = dma.smem_to_hbm [#allocation3], 16, %s47, [#allocation4]
    $region17: #{deformation_prior_loss.1} parent=1 // pred_fallthru
      _
    // Predicated region
    $region18: #{deformation_prior_loss.1} parent=1 // pred_check
      _
    $region19: #{deformation_prior_loss.1} parent=1 // pred_check_branch
      %51 = sbr.rel (0) target = $region21
    $region20: #{deformation_prior_loss.1} parent=1 // pred_region
      %53 = dma.done [#allocation4], 16
    $region21: #{deformation_prior_loss.1} parent=1 // pred_fallthru
      _
    %54 = sfence
    %55 = vsyncpa [#allocation4], 1

</llo_original>
